<compile_context>
chip_gen: v7x
topology: tpu7x:2x2x1
jax: 0.10.0
libtpu: 0.0.40
codegen_flags: <defaults>
</compile_context>

<pallas_src>
import functools

import jax
import jax.numpy as jnp
from jax import lax
from jax.experimental import pallas as pl
from jax.experimental.pallas import tpu as pltpu


def _round_up(x, m):
    return ((x + m - 1) // m) * m


def _dwsep_kernel(xp_ref, dwp_ref, pwp_ref, o_ref, *, K, Wp, W, Cin, Cout):
    """One grid step processes NB images.

    xp_ref : (Cin,  NB*S)   image j of this block lives in lanes [j*S, (j+1)*S);
                            the first Hp*Wp lanes of each span hold the zero-padded
                            image (row-major), the remaining lanes are zeros.
    dwp_ref: (Cin,  K*K+1)  packed [depthwise taps | depthwise bias]
    pwp_ref: (Cout, Cin+1)  packed [1x1 weights    | pointwise bias]
    o_ref  : (Cout, NB*S)   only lanes [0, W) are written; W = NB*S - T, multiple of 128
    """
    # Single hoisted loads; all tap windows below are in-register value slices,
    # not unaligned ref loads (cuts vector-load slot traffic ~K*K x).
    x = xp_ref[...].astype(jnp.float32)            # (Cin, NB*S)
    dwp = dwp_ref[...].astype(jnp.float32)         # (Cin, K*K+1)
    pwp = pwp_ref[...].astype(jnp.float32)         # (Cout, Cin+1)

    # ---- depthwise: K*K shifted-window FMAs along the flattened lane axis ----
    # Accumulator starts at the depthwise bias (saves a separate full-width add pass).
    acc = jnp.broadcast_to(dwp[:, K * K:K * K + 1], (Cin, W))
    for kh in range(K):
        for kw in range(K):
            s = kh * Wp + kw          # flat lane shift of this tap (stride=1, dilation=1)
            t = kh * K + kw
            acc = acc + x[:, s:s + W] * dwp[:, t:t + 1]

    # ---- pointwise 1x1 conv: one pass over every image in the block ----
    # Rows are Cin only (no per-batch, non-8-aligned sublane slicing); the bias
    # broadcast is hoisted out of the channel loop.
    out = jnp.broadcast_to(pwp[:, Cin:Cin + 1], (Cout, W))
    if Cin >= 128 and Cout >= 128:
        # Only worth an MXU pass when channel counts approach the native MXU tile.
        out = out + jnp.dot(pwp[:, :Cin], acc, preferred_element_type=jnp.float32)
    else:
        for ci in range(Cin):         # VPU multiply-add over the tiny channel axis
            out = out + pwp[:, ci:ci + 1] * acc[ci:ci + 1, :]

    o_ref[:, :W] = out.astype(o_ref.dtype)         # lane-dense store (W % 128 == 0)


def _images_per_block(n_images):
    """One image per grid step on multi-TensorCore chips (v7x) so the 'parallel' grid
    axis is sharded across cores; a single whole-batch step elsewhere (v5e/v6e) to
    avoid per-step pipeline overhead at these tiny sizes."""
    try:
        kind = jax.devices()[0].device_kind.lower()
    except Exception:
        kind = ""
    if "v7" in kind or "7x" in kind:
        return 1
    return n_images


def depthwise_separable_conv2d(x_nchw, w_dw, b_dw, w_pw, b_pw, padding):
    """x_nchw: (N, Cin, H, W); w_dw: (Cin, 1, K, K); b_dw: (Cin,);
    w_pw: (Cout, Cin, 1, 1); b_pw: (Cout,). Returns (N, Cout, Ho, Wo) in NCHW."""
    N, Cin, H, Wd = x_nchw.shape
    K = w_dw.shape[-1]
    Cout = w_pw.shape[0]
    Hp, Wp = H + 2 * padding, Wd + 2 * padding
    Ho, Wo = Hp - K + 1, Wp - K + 1
    L = (Ho - 1) * Wp + Wo                    # flat span covering every valid output pixel
    Smax = (K - 1) * Wp + (K - 1)             # largest tap shift
    T = _round_up(max(Smax, 1), 128)          # lane tail so every tap window is in-bounds
    S = _round_up(max(Hp * Wp, L + T), 128)   # per-image lane span (input and output)

    NB = _images_per_block(N)                 # images per grid step (1 on v7x, N else)
    num_blocks = N // NB
    Wacc = NB * S - T                         # lane-dense store width (multiple of 128)

    # --- layout prep (plain JAX glue; contiguous reshapes/pads only) ---
    xp = jnp.pad(x_nchw, ((0, 0), (0, 0), (padding, padding), (padding, padding)))
    xp = xp.reshape(N, Cin, Hp * Wp)
    xp = jnp.pad(xp, ((0, 0), (0, 0), (0, S - Hp * Wp)))          # 128-multiple spans
    xp = jnp.transpose(xp, (1, 0, 2)).reshape(Cin, N * S)          # rows=Cin, lanes=N*S

    # Pack the small parameter arrays (fewer, aligned transfers).
    dwp = jnp.concatenate(
        [w_dw[:, 0, :, :].reshape(Cin, K * K), b_dw.reshape(Cin, 1)], axis=1
    ).astype(jnp.float32)                                          # (Cin, K*K+1)
    pwp = jnp.concatenate(
        [w_pw[:, :, 0, 0], b_pw.reshape(Cout, 1)], axis=1
    ).astype(jnp.float32)                                          # (Cout, Cin+1)

    kernel = functools.partial(_dwsep_kernel, K=K, Wp=Wp, W=Wacc, Cin=Cin, Cout=Cout)

    out_flat = pl.pallas_call(
        kernel,
        out_shape=jax.ShapeDtypeStruct((Cout, N * S), x_nchw.dtype),
        grid_spec=pltpu.PrefetchScalarGridSpec(
            num_scalar_prefetch=0,
            grid=(num_blocks,),
            in_specs=[
                pl.BlockSpec((Cin, NB * S), lambda b: (0, b)),
                pl.BlockSpec((Cin, K * K + 1), lambda b: (0, 0)),   # resident params
                pl.BlockSpec((Cout, Cin + 1), lambda b: (0, 0)),    # resident params
            ],
            out_specs=pl.BlockSpec((Cout, NB * S), lambda b: (0, b)),
        ),
        compiler_params=pltpu.CompilerParams(dimension_semantics=("parallel",)),
    )(xp, dwp, pwp)

    # --- unflatten: per-image span -> (Ho, Wp), drop the Wp-Wo wrap columns ---
    out = out_flat.reshape(Cout, N, S)[:, :, :Ho * Wp]
    out = out.reshape(Cout, N, Ho, Wp)[..., :Wo]
    return jnp.transpose(out, (1, 0, 2, 3))


def _reference(x_nchw, w_dw, b_dw, w_pw, b_pw, padding):
    # Pure-JAX reference using lax conv (NCHW convention, matches PyTorch).
    Cin = x_nchw.shape[1]
    dw = lax.conv_general_dilated(
        x_nchw, w_dw, window_strides=(1, 1),
        padding=[(padding, padding), (padding, padding)],
        dimension_numbers=("NCHW", "OIHW", "NCHW"),
        feature_group_count=Cin,
    ) + b_dw.reshape(1, -1, 1, 1)
    pw = lax.conv_general_dilated(
        dw, w_pw, window_strides=(1, 1), padding=[(0, 0), (0, 0)],
        dimension_numbers=("NCHW", "OIHW", "NCHW"),
    ) + b_pw.reshape(1, -1, 1, 1)
    return pw


if __name__ == "__main__":
    # Small shapes consistent with the module's forward.
    N, Cin, H, W = 2, 4, 16, 16
    Cout, K, padding = 8, 3, 1

    key = jax.random.PRNGKey(0)
    k_x, k_wdw, k_bdw, k_wpw, k_bpw = jax.random.split(key, 5)

    x = jax.random.normal(k_x, (N, Cin, H, W), dtype=jnp.float32)
    # Deterministic synthetic parameters (matching nn.Conv2d parameter shapes).
    w_dw = jax.random.normal(k_wdw, (Cin, 1, K, K), dtype=jnp.float32) * 0.1
    b_dw = jax.random.normal(k_bdw, (Cin,), dtype=jnp.float32) * 0.1
    w_pw = jax.random.normal(k_wpw, (Cout, Cin, 1, 1), dtype=jnp.float32) * 0.1
    b_pw = jax.random.normal(k_bpw, (Cout,), dtype=jnp.float32) * 0.1

    out = depthwise_separable_conv2d(x, w_dw, b_dw, w_pw, b_pw, padding)
    out = jax.block_until_ready(out)

    ref = _reference(x, w_dw, b_dw, w_pw, b_pw, padding)
    assert out.shape == (N, Cout, H, W), out.shape
    assert jnp.allclose(out, ref, atol=1e-5, rtol=1e-5), "mismatch vs reference"

    print("KERNEL_OK")
</pallas_src>

<mosaic_0001>
module attributes {stable_mosaic.version = 11 : i64} {
  func.func @_dwsep_kernel(%arg0: i32, %arg1: memref<4x1024xf32, #tpu.memory_space<vmem>>, %arg2: memref<4x10xf32, #tpu.memory_space<vmem>>, %arg3: memref<8x5xf32, #tpu.memory_space<vmem>>, %arg4: memref<8x1024xf32, #tpu.memory_space<vmem>>) attributes {dimension_semantics = [#tpu.dimension_semantics<parallel>], iteration_bounds = array<i64: 1>, scalar_prefetch = 0 : i64, scratch_operands = 0 : i64, tpu.core_type = #tpu.core_type<tc>, window_params = [{transform_indices = @transform_0, window_bounds = array<i64: 4, 1024>}, {pipeline_mode = #tpu.pipeline_mode<synchronous>, transform_indices = @transform_1, window_bounds = array<i64: 4, 10>}, {pipeline_mode = #tpu.pipeline_mode<synchronous>, transform_indices = @transform_2, window_bounds = array<i64: 8, 5>}, {transform_indices = @transform_3, window_bounds = array<i64: 8, 1024>}]} {
    %c0 = arith.constant 0 : index
    %c0_0 = arith.constant 0 : index
    %0 = vector.load %arg1[%c0, %c0_0] : memref<4x1024xf32, #tpu.memory_space<vmem>>, vector<4x1024xf32>
    %c0_1 = arith.constant 0 : index
    %c0_2 = arith.constant 0 : index
    %1 = vector.load %arg2[%c0_1, %c0_2] : memref<4x10xf32, #tpu.memory_space<vmem>>, vector<4x10xf32>
    %c0_3 = arith.constant 0 : index
    %c0_4 = arith.constant 0 : index
    %2 = vector.load %arg3[%c0_3, %c0_4] : memref<8x5xf32, #tpu.memory_space<vmem>>, vector<8x5xf32>
    %3 = vector.extract_strided_slice %1 {offsets = [0, 9], sizes = [4, 1], strides = [1, 1]} : vector<4x10xf32> to vector<4x1xf32>
    %4 = vector.shape_cast %3 : vector<4x1xf32> to vector<4x1xf32>
    %5 = vector.broadcast %4 : vector<4x1xf32> to vector<4x896xf32>
    %6 = vector.extract_strided_slice %0 {offsets = [0, 0], sizes = [4, 896], strides = [1, 1]} : vector<4x1024xf32> to vector<4x896xf32>
    %7 = vector.extract_strided_slice %1 {offsets = [0, 0], sizes = [4, 1], strides = [1, 1]} : vector<4x10xf32> to vector<4x1xf32>
    %8 = vector.broadcast %7 : vector<4x1xf32> to vector<4x896xf32>
    %9 = arith.mulf %6, %8 : vector<4x896xf32>
    %10 = arith.addf %5, %9 : vector<4x896xf32>
    %11 = vector.extract_strided_slice %0 {offsets = [0, 1], sizes = [4, 896], strides = [1, 1]} : vector<4x1024xf32> to vector<4x896xf32>
    %12 = vector.extract_strided_slice %1 {offsets = [0, 1], sizes = [4, 1], strides = [1, 1]} : vector<4x10xf32> to vector<4x1xf32>
    %13 = vector.broadcast %12 : vector<4x1xf32> to vector<4x896xf32>
    %14 = arith.mulf %11, %13 : vector<4x896xf32>
    %15 = arith.addf %10, %14 : vector<4x896xf32>
    %16 = vector.extract_strided_slice %0 {offsets = [0, 2], sizes = [4, 896], strides = [1, 1]} : vector<4x1024xf32> to vector<4x896xf32>
    %17 = vector.extract_strided_slice %1 {offsets = [0, 2], sizes = [4, 1], strides = [1, 1]} : vector<4x10xf32> to vector<4x1xf32>
    %18 = vector.broadcast %17 : vector<4x1xf32> to vector<4x896xf32>
    %19 = arith.mulf %16, %18 : vector<4x896xf32>
    %20 = arith.addf %15, %19 : vector<4x896xf32>
    %21 = vector.extract_strided_slice %0 {offsets = [0, 18], sizes = [4, 896], strides = [1, 1]} : vector<4x1024xf32> to vector<4x896xf32>
    %22 = vector.extract_strided_slice %1 {offsets = [0, 3], sizes = [4, 1], strides = [1, 1]} : vector<4x10xf32> to vector<4x1xf32>
    %23 = vector.broadcast %22 : vector<4x1xf32> to vector<4x896xf32>
    %24 = arith.mulf %21, %23 : vector<4x896xf32>
    %25 = arith.addf %20, %24 : vector<4x896xf32>
    %26 = vector.extract_strided_slice %0 {offsets = [0, 19], sizes = [4, 896], strides = [1, 1]} : vector<4x1024xf32> to vector<4x896xf32>
    %27 = vector.extract_strided_slice %1 {offsets = [0, 4], sizes = [4, 1], strides = [1, 1]} : vector<4x10xf32> to vector<4x1xf32>
    %28 = vector.broadcast %27 : vector<4x1xf32> to vector<4x896xf32>
    %29 = arith.mulf %26, %28 : vector<4x896xf32>
    %30 = arith.addf %25, %29 : vector<4x896xf32>
    %31 = vector.extract_strided_slice %0 {offsets = [0, 20], sizes = [4, 896], strides = [1, 1]} : vector<4x1024xf32> to vector<4x896xf32>
    %32 = vector.extract_strided_slice %1 {offsets = [0, 5], sizes = [4, 1], strides = [1, 1]} : vector<4x10xf32> to vector<4x1xf32>
    %33 = vector.broadcast %32 : vector<4x1xf32> to vector<4x896xf32>
    %34 = arith.mulf %31, %33 : vector<4x896xf32>
    %35 = arith.addf %30, %34 : vector<4x896xf32>
    %36 = vector.extract_strided_slice %0 {offsets = [0, 36], sizes = [4, 896], strides = [1, 1]} : vector<4x1024xf32> to vector<4x896xf32>
    %37 = vector.extract_strided_slice %1 {offsets = [0, 6], sizes = [4, 1], strides = [1, 1]} : vector<4x10xf32> to vector<4x1xf32>
    %38 = vector.broadcast %37 : vector<4x1xf32> to vector<4x896xf32>
    %39 = arith.mulf %36, %38 : vector<4x896xf32>
    %40 = arith.addf %35, %39 : vector<4x896xf32>
    %41 = vector.extract_strided_slice %0 {offsets = [0, 37], sizes = [4, 896], strides = [1, 1]} : vector<4x1024xf32> to vector<4x896xf32>
    %42 = vector.extract_strided_slice %1 {offsets = [0, 7], sizes = [4, 1], strides = [1, 1]} : vector<4x10xf32> to vector<4x1xf32>
    %43 = vector.broadcast %42 : vector<4x1xf32> to vector<4x896xf32>
    %44 = arith.mulf %41, %43 : vector<4x896xf32>
    %45 = arith.addf %40, %44 : vector<4x896xf32>
    %46 = vector.extract_strided_slice %0 {offsets = [0, 38], sizes = [4, 896], strides = [1, 1]} : vector<4x1024xf32> to vector<4x896xf32>
    %47 = vector.extract_strided_slice %1 {offsets = [0, 8], sizes = [4, 1], strides = [1, 1]} : vector<4x10xf32> to vector<4x1xf32>
    %48 = vector.broadcast %47 : vector<4x1xf32> to vector<4x896xf32>
    %49 = arith.mulf %46, %48 : vector<4x896xf32>
    %50 = arith.addf %45, %49 : vector<4x896xf32>
    %51 = vector.extract_strided_slice %2 {offsets = [0, 4], sizes = [8, 1], strides = [1, 1]} : vector<8x5xf32> to vector<8x1xf32>
    %52 = vector.shape_cast %51 : vector<8x1xf32> to vector<8x1xf32>
    %53 = vector.broadcast %52 : vector<8x1xf32> to vector<8x896xf32>
    %54 = vector.extract_strided_slice %2 {offsets = [0, 0], sizes = [8, 1], strides = [1, 1]} : vector<8x5xf32> to vector<8x1xf32>
    %55 = vector.extract_strided_slice %50 {offsets = [0, 0], sizes = [1, 896], strides = [1, 1]} : vector<4x896xf32> to vector<1x896xf32>
    %56 = vector.broadcast %54 : vector<8x1xf32> to vector<8x896xf32>
    %57 = vector.broadcast %55 : vector<1x896xf32> to vector<8x896xf32>
    %58 = arith.mulf %56, %57 : vector<8x896xf32>
    %59 = arith.addf %53, %58 : vector<8x896xf32>
    %60 = vector.extract_strided_slice %2 {offsets = [0, 1], sizes = [8, 1], strides = [1, 1]} : vector<8x5xf32> to vector<8x1xf32>
    %61 = vector.extract_strided_slice %50 {offsets = [1, 0], sizes = [1, 896], strides = [1, 1]} : vector<4x896xf32> to vector<1x896xf32>
    %62 = vector.broadcast %60 : vector<8x1xf32> to vector<8x896xf32>
    %63 = vector.broadcast %61 : vector<1x896xf32> to vector<8x896xf32>
    %64 = arith.mulf %62, %63 : vector<8x896xf32>
    %65 = arith.addf %59, %64 : vector<8x896xf32>
    %66 = vector.extract_strided_slice %2 {offsets = [0, 2], sizes = [8, 1], strides = [1, 1]} : vector<8x5xf32> to vector<8x1xf32>
    %67 = vector.extract_strided_slice %50 {offsets = [2, 0], sizes = [1, 896], strides = [1, 1]} : vector<4x896xf32> to vector<1x896xf32>
    %68 = vector.broadcast %66 : vector<8x1xf32> to vector<8x896xf32>
    %69 = vector.broadcast %67 : vector<1x896xf32> to vector<8x896xf32>
    %70 = arith.mulf %68, %69 : vector<8x896xf32>
    %71 = arith.addf %65, %70 : vector<8x896xf32>
    %72 = vector.extract_strided_slice %2 {offsets = [0, 3], sizes = [8, 1], strides = [1, 1]} : vector<8x5xf32> to vector<8x1xf32>
    %73 = vector.extract_strided_slice %50 {offsets = [3, 0], sizes = [1, 896], strides = [1, 1]} : vector<4x896xf32> to vector<1x896xf32>
    %74 = vector.broadcast %72 : vector<8x1xf32> to vector<8x896xf32>
    %75 = vector.broadcast %73 : vector<1x896xf32> to vector<8x896xf32>
    %76 = arith.mulf %74, %75 : vector<8x896xf32>
    %77 = arith.addf %71, %76 : vector<8x896xf32>
    %c0_5 = arith.constant 0 : index
    %c0_6 = arith.constant 0 : index
    %78 = vector.load %arg4[%c0_5, %c0_6] : memref<8x1024xf32, #tpu.memory_space<vmem>>, vector<8x896xf32>
    tpu.vector_store %arg4[%c0_5, %c0_6], %77 {strides = array<i32>} : memref<8x1024xf32, #tpu.memory_space<vmem>>, vector<8x896xf32>,
    return
  }
  func.func @transform_0(%arg0: i32) -> (i32, i32) {
    %c0_i32 = arith.constant 0 : i32
    %c0_i32_0 = arith.constant 0 : i32
    return %c0_i32, %arg0 : i32, i32
  }
  func.func @transform_1(%arg0: i32) -> (i32, i32) {
    %c0_i32 = arith.constant 0 : i32
    %c0_i32_0 = arith.constant 0 : i32
    %c0_i32_1 = arith.constant 0 : i32
    return %c0_i32, %c0_i32_0 : i32, i32
  }
  func.func @transform_2(%arg0: i32) -> (i32, i32) {
    %c0_i32 = arith.constant 0 : i32
    %c0_i32_0 = arith.constant 0 : i32
    %c0_i32_1 = arith.constant 0 : i32
    return %c0_i32, %c0_i32_0 : i32, i32
  }
  func.func @transform_3(%arg0: i32) -> (i32, i32) {
    %c0_i32 = arith.constant 0 : i32
    %c0_i32_0 = arith.constant 0 : i32
    return %c0_i32, %arg0 : i32, i32
  }
}

</mosaic_0001>

<llo_original>
// kernel: tpu_custom_call.1
$region0: #{tpu_custom_call.1}
  #allocation0 [shape = 'u32[]', space=smem, size = 0x4, offset = 0x4, fixed_abs, tag = 'smem constant byte address 0x4 - core index']
  #allocation1 [shape = 'u32[144,128]{1,0:T(1,128)}', space=vmem, size = 0x12000, scoped, tag = 'internal scratch']
  %s0 = inlined_call_operand.hbm [shape: f32[4,1024], index: 0, kind: input, shape index: {}]
  %s1 = inlined_call_operand.hbm [shape: f32[4,10], index: 1, kind: input, shape index: {}]
  %s2 = inlined_call_operand.hbm [shape: f32[8,5], index: 2, kind: input, shape index: {}]
  %s3 = inlined_call_operand.hbm [shape: f32[8,1024], index: 3, kind: output, shape index: {}]
  %s4 = sld [smem:[#allocation0]]
  $region34: #{tpu_custom_call.1} parent=0
    _
  %s6 = ssub.s32 1, %s4
  %s7 = scalar_select 0, %s6, %s4
  $region1: #{tpu_custom_call.1} parent=0
    #allocation2 [shape = 'u8[16384]{0}', space=vmem, size = 0x4000, scoped, tag = 'input window, operand 0, single buffered']
    #allocation3 [shape = 's32[1]{0}', space=sflag, size = 0x4, scoped, tag = 'scoped memory for tpu_custom_call.1']
    #allocation4 [shape = 's32[1]{0}', space=sflag, size = 0x4, scoped, tag = 'scoped memory for tpu_custom_call.1']
    #allocation5 [shape = 'u8[2048]{0}', space=vmem, size = 0x800, scoped, tag = 'input window, operand 1, single buffered']
    #allocation6 [shape = 's32[1]{0}', space=sflag, size = 0x4, scoped, tag = 'scoped memory for tpu_custom_call.1']
    #allocation7 [shape = 'u8[4096]{0}', space=vmem, size = 0x1000, scoped, tag = 'input window, operand 2, single buffered']
    #allocation8 [shape = 'u8[32768]{0}', space=vmem, size = 0x8000, scoped, tag = 'output window, operand 0, single buffered']
    %8 = vsyncpa [#allocation3], 0
    %9 = vsyncpa [#allocation6], 0
    %10 = vsyncpa [#allocation4], 0
    // Predicated region
    $region2: #{tpu_custom_call.1} parent=1 // pred_check
      _
    $region3: #{tpu_custom_call.1} parent=1 // pred_check_branch
      %12 = sbr.rel (0) target = $region5
    $region4: #{tpu_custom_call.1} parent=1 // pred_region
      %s14 = ssub.s32 512, 512
      %15 = vsyncadd [#allocation3], %s14
      %s17 = sshll.u32 [#allocation2], 4
      %s18 = int_to_ptr.vmem [resolvable:$true] %s17
      %20 = dma.hbm_to_vmem [thread:$0]  %s0, 512, %s18, [#allocation3]
    $region5: #{tpu_custom_call.1} parent=1 // pred_fallthru
      _
    // Predicated region
    $region6: #{tpu_custom_call.1} parent=1 // pred_check
      _
    $region7: #{tpu_custom_call.1} parent=1 // pred_check_branch
      %22 = sbr.rel (0) target = $region9
    $region8: #{tpu_custom_call.1} parent=1 // pred_region
      %s24 = ssub.s32 64, 64
      %25 = vsyncadd [#allocation6], %s24
      %s27 = sshll.u32 [#allocation5], 4
      %s28 = int_to_ptr.vmem [resolvable:$true] %s27
      %30 = dma.hbm_to_vmem [thread:$0]  %s1, 64, %s28, [#allocation6]
    $region9: #{tpu_custom_call.1} parent=1 // pred_fallthru
      _
    // Predicated region
    $region10: #{tpu_custom_call.1} parent=1 // pred_check
      _
    $region11: #{tpu_custom_call.1} parent=1 // pred_check_branch
      %32 = sbr.rel (0) target = $region13
    $region12: #{tpu_custom_call.1} parent=1 // pred_region
      %s34 = ssub.s32 128, 128
      %35 = vsyncadd [#allocation6], %s34
      %s37 = sshll.u32 [#allocation7], 4
      %s38 = int_to_ptr.vmem [resolvable:$true] %s37
      %40 = dma.hbm_to_vmem [thread:$0]  %s2, 128, %s38, [#allocation6]
    $region13: #{tpu_custom_call.1} parent=1 // pred_fallthru
      _
    // Predicated region
    $region14: #{tpu_custom_call.1} parent=1 // pred_check
      _
    $region15: #{tpu_custom_call.1} parent=1 // pred_check_branch
      %42 = sbr.rel (0) target = $region17
    $region16: #{tpu_custom_call.1} parent=1 // pred_region
      %43 = dma.done [#allocation3], 512
    $region17: #{tpu_custom_call.1} parent=1 // pred_fallthru
      _
    // Predicated region
    $region18: #{tpu_custom_call.1} parent=1 // pred_check
      _
    $region19: #{tpu_custom_call.1} parent=1 // pred_check_branch
      %45 = sbr.rel (0) target = $region21
    $region20: #{tpu_custom_call.1} parent=1 // pred_region
      %46 = dma.done [#allocation6], 64
    $region21: #{tpu_custom_call.1} parent=1 // pred_fallthru
      _
    // Predicated region
    $region22: #{tpu_custom_call.1} parent=1 // pred_check
      _
    $region23: #{tpu_custom_call.1} parent=1 // pred_check_branch
      %48 = sbr.rel (0) target = $region25
    $region24: #{tpu_custom_call.1} parent=1 // pred_region
      %49 = dma.done [#allocation6], 128
    $region25: #{tpu_custom_call.1} parent=1 // pred_fallthru
      _
    %v50 = vld [vmem:[#allocation2] sm:$0xff]
    %v51 = vld [vmem:[#allocation2 + $0x8] sm:$0xff]
    %v52 = vld [vmem:[#allocation2 + $0x10] sm:$0xff]
    %v53 = vld [vmem:[#allocation2 + $0x18] sm:$0xff]
    %v54 = vld [vmem:[#allocation5] sm:$0xf]
    %v55 = vld [vmem:[#allocation7] sm:$0xff]
    %57 = vset.pattern.permute.xlu0 9
    %58 = vperm.xlu0 %57, %v54
    %v59 = vpop.permute.xlu0 %58
    %61 = vset.pattern.permute.xlu0 0
    %62 = vperm.xlu0 %61, %v54
    %v63 = vpop.permute.xlu0 %62
    %v65 = vunpack.c.l.s4 839922192
    %v66 = vunpack.c.0.s8 %v65
    %v67 = vlaneseq
    %v68 = vshrl.u32 %v67, 7
    %v69 = vsub.s32 %v66, %v68
    %v70 = vrot.slane %v63, %v69
    %v72 = vmul.f32 %v50, %v70
    %v73 = vmul.f32 %v51, %v70
    %v74 = vmul.f32 %v52, %v70
    %v75 = vmul.f32 %v53, %v70
    %v79 = vcombine.high %v72, %v72
    %v80 = vcombine.high %v73, %v73
    %v81 = vcombine.high %v74, %v74
    %v85 = vadd.f32 %v59, %v72
    %v86 = vadd.f32 %v59, %v79
    %v87 = vadd.f32 %v59, %v73
    %v88 = vadd.f32 %v59, %v80
    %v89 = vadd.f32 %v59, %v74
    %v90 = vadd.f32 %v59, %v81
    %v91 = vadd.f32 %v59, %v75
    %92 = vset.pattern.permute.xlu0 1
    %93 = vperm.xlu0 %92, %v54
    %v94 = vpop.permute.xlu0 %93
    %v96 = vunpack.c.l.s4 839922192
    %v97 = vunpack.c.0.s8 %v96
    %v98 = vlaneseq
    %v99 = vshrl.u32 %v98, 7
    %v100 = vsub.s32 %v97, %v99
    %v101 = vrot.slane %v94, %v100
    %v103 = vmul.f32 %v50, %v101
    %v104 = vmul.f32 %v51, %v101
    %v105 = vmul.f32 %v52, %v101
    %v106 = vmul.f32 %v53, %v101
    %v111 = vcombine.high %v103, %v103
    %v112 = vcombine.high %v104, %v104
    %v113 = vcombine.high %v105, %v105
    %v114 = vcombine.high %v106, %v106
    %115 = vrot.lane.b32.xlu0 %v103, 127
    %v116 = vpop.permute.xlu0 %115
    %117 = vrot.lane.b32.xlu0 %v111, 127
    %v118 = vpop.permute.xlu0 %117
    %119 = vrot.lane.b32.xlu0 %v104, 127
    %v120 = vpop.permute.xlu0 %119
    %121 = vrot.lane.b32.xlu0 %v112, 127
    %v122 = vpop.permute.xlu0 %121
    %123 = vrot.lane.b32.xlu0 %v105, 127
    %v124 = vpop.permute.xlu0 %123
    %125 = vrot.lane.b32.xlu0 %v113, 127
    %v126 = vpop.permute.xlu0 %125
    %127 = vrot.lane.b32.xlu0 %v106, 127
    %v128 = vpop.permute.xlu0 %127
    %129 = vrot.lane.b32.xlu0 %v114, 127
    %v130 = vpop.permute.xlu0 %129
    %vm131 = vcmask 1039360
    %v132 = vsel %vm131, %v116, %v118
    %v133 = vsel %vm131, %v118, %v120
    %v134 = vsel %vm131, %v120, %v122
    %v135 = vsel %vm131, %v122, %v124
    %v136 = vsel %vm131, %v124, %v126
    %v137 = vsel %vm131, %v126, %v128
    %v138 = vsel %vm131, %v128, %v130
    %v146 = vadd.f32 %v85, %v132
    %v147 = vadd.f32 %v86, %v133
    %v148 = vadd.f32 %v87, %v134
    %v149 = vadd.f32 %v88, %v135
    %v150 = vadd.f32 %v89, %v136
    %v151 = vadd.f32 %v90, %v137
    %v152 = vadd.f32 %v91, %v138
    %153 = vset.pattern.permute.xlu0 2
    %154 = vperm.xlu0 %153, %v54
    %v155 = vpop.permute.xlu0 %154
    %v157 = vunpack.c.l.s4 839922192
    %v158 = vunpack.c.0.s8 %v157
    %v159 = vlaneseq
    %v160 = vshrl.u32 %v159, 7
    %v161 = vsub.s32 %v158, %v160
    %v162 = vrot.slane %v155, %v161
    %v164 = vmul.f32 %v50, %v162
    %v165 = vmul.f32 %v51, %v162
    %v166 = vmul.f32 %v52, %v162
    %v167 = vmul.f32 %v53, %v162
    %v172 = vcombine.high %v164, %v164
    %v173 = vcombine.high %v165, %v165
    %v174 = vcombine.high %v166, %v166
    %v175 = vcombine.high %v167, %v167
    %176 = vrot.lane.b32.xlu0 %v164, 126
    %v177 = vpop.permute.xlu0 %176
    %178 = vrot.lane.b32.xlu0 %v172, 126
    %v179 = vpop.permute.xlu0 %178
    %180 = vrot.lane.b32.xlu0 %v165, 126
    %v181 = vpop.permute.xlu0 %180
    %182 = vrot.lane.b32.xlu0 %v173, 126
    %v183 = vpop.permute.xlu0 %182
    %184 = vrot.lane.b32.xlu0 %v166, 126
    %v185 = vpop.permute.xlu0 %184
    %186 = vrot.lane.b32.xlu0 %v174, 126
    %v187 = vpop.permute.xlu0 %186
    %188 = vrot.lane.b32.xlu0 %v167, 126
    %v189 = vpop.permute.xlu0 %188
    %190 = vrot.lane.b32.xlu0 %v175, 126
    %v191 = vpop.permute.xlu0 %190
    %vm192 = vcmask 1031168
    %v193 = vsel %vm192, %v177, %v179
    %v194 = vsel %vm192, %v179, %v181
    %v195 = vsel %vm192, %v181, %v183
    %v196 = vsel %vm192, %v183, %v185
    %v197 = vsel %vm192, %v185, %v187
    %v198 = vsel %vm192, %v187, %v189
    %v199 = vsel %vm192, %v189, %v191
    %v207 = vadd.f32 %v146, %v193
    %v208 = vadd.f32 %v147, %v194
    %v209 = vadd.f32 %v148, %v195
    %v210 = vadd.f32 %v149, %v196
    %v211 = vadd.f32 %v150, %v197
    %v212 = vadd.f32 %v151, %v198
    %v213 = vadd.f32 %v152, %v199
    %214 = vset.pattern.permute.xlu0 3
    %215 = vperm.xlu0 %214, %v54
    %v216 = vpop.permute.xlu0 %215
    %v218 = vunpack.c.l.s4 839922192
    %v219 = vunpack.c.0.s8 %v218
    %v220 = vlaneseq
    %v221 = vshrl.u32 %v220, 7
    %v222 = vsub.s32 %v219, %v221
    %v223 = vrot.slane %v216, %v222
    %v225 = vmul.f32 %v50, %v223
    %v226 = vmul.f32 %v51, %v223
    %v227 = vmul.f32 %v52, %v223
    %v228 = vmul.f32 %v53, %v223
    %v233 = vcombine.high %v225, %v225
    %v234 = vcombine.high %v226, %v226
    %v235 = vcombine.high %v227, %v227
    %v236 = vcombine.high %v228, %v228
    %237 = vrot.lane.b32.xlu0 %v225, 110
    %v238 = vpop.permute.xlu0 %237
    %239 = vrot.lane.b32.xlu0 %v233, 110
    %v240 = vpop.permute.xlu0 %239
    %241 = vrot.lane.b32.xlu0 %v226, 110
    %v242 = vpop.permute.xlu0 %241
    %243 = vrot.lane.b32.xlu0 %v234, 110
    %v244 = vpop.permute.xlu0 %243
    %245 = vrot.lane.b32.xlu0 %v227, 110
    %v246 = vpop.permute.xlu0 %245
    %247 = vrot.lane.b32.xlu0 %v235, 110
    %v248 = vpop.permute.xlu0 %247
    %249 = vrot.lane.b32.xlu0 %v228, 110
    %v250 = vpop.permute.xlu0 %249
    %251 = vrot.lane.b32.xlu0 %v236, 110
    %v252 = vpop.permute.xlu0 %251
    %vm253 = vcmask 900096
    %v254 = vsel %vm253, %v238, %v240
    %v255 = vsel %vm253, %v240, %v242
    %v256 = vsel %vm253, %v242, %v244
    %v257 = vsel %vm253, %v244, %v246
    %v258 = vsel %vm253, %v246, %v248
    %v259 = vsel %vm253, %v248, %v250
    %v260 = vsel %vm253, %v250, %v252
    %v268 = vadd.f32 %v207, %v254
    %v269 = vadd.f32 %v208, %v255
    %v270 = vadd.f32 %v209, %v256
    %v271 = vadd.f32 %v210, %v257
    %v272 = vadd.f32 %v211, %v258
    %v273 = vadd.f32 %v212, %v259
    %v274 = vadd.f32 %v213, %v260
    %275 = vset.pattern.permute.xlu0 4
    %276 = vperm.xlu0 %275, %v54
    %v277 = vpop.permute.xlu0 %276
    %v279 = vunpack.c.l.s4 839922192
    %v280 = vunpack.c.0.s8 %v279
    %v281 = vlaneseq
    %v282 = vshrl.u32 %v281, 7
    %v283 = vsub.s32 %v280, %v282
    %v284 = vrot.slane %v277, %v283
    %v286 = vmul.f32 %v50, %v284
    %v287 = vmul.f32 %v51, %v284
    %v288 = vmul.f32 %v52, %v284
    %v289 = vmul.f32 %v53, %v284
    %v294 = vcombine.high %v286, %v286
    %v295 = vcombine.high %v287, %v287
    %v296 = vcombine.high %v288, %v288
    %v297 = vcombine.high %v289, %v289
    %298 = vrot.lane.b32.xlu0 %v286, 109
    %v299 = vpop.permute.xlu0 %298
    %300 = vrot.lane.b32.xlu0 %v294, 109
    %v301 = vpop.permute.xlu0 %300
    %302 = vrot.lane.b32.xlu0 %v287, 109
    %v303 = vpop.permute.xlu0 %302
    %304 = vrot.lane.b32.xlu0 %v295, 109
    %v305 = vpop.permute.xlu0 %304
    %306 = vrot.lane.b32.xlu0 %v288, 109
    %v307 = vpop.permute.xlu0 %306
    %308 = vrot.lane.b32.xlu0 %v296, 109
    %v309 = vpop.permute.xlu0 %308
    %310 = vrot.lane.b32.xlu0 %v289, 109
    %v311 = vpop.permute.xlu0 %310
    %312 = vrot.lane.b32.xlu0 %v297, 109
    %v313 = vpop.permute.xlu0 %312
    %vm314 = vcmask 891904
    %v315 = vsel %vm314, %v299, %v301
    %v316 = vsel %vm314, %v301, %v303
    %v317 = vsel %vm314, %v303, %v305
    %v318 = vsel %vm314, %v305, %v307
    %v319 = vsel %vm314, %v307, %v309
    %v320 = vsel %vm314, %v309, %v311
    %v321 = vsel %vm314, %v311, %v313
    %v329 = vadd.f32 %v268, %v315
    %v330 = vadd.f32 %v269, %v316
    %v331 = vadd.f32 %v270, %v317
    %v332 = vadd.f32 %v271, %v318
    %v333 = vadd.f32 %v272, %v319
    %v334 = vadd.f32 %v273, %v320
    %v335 = vadd.f32 %v274, %v321
    %336 = vset.pattern.permute.xlu0 5
    %337 = vperm.xlu0 %336, %v54
    %v338 = vpop.permute.xlu0 %337
    %v340 = vunpack.c.l.s4 839922192
    %v341 = vunpack.c.0.s8 %v340
    %v342 = vlaneseq
    %v343 = vshrl.u32 %v342, 7
    %v344 = vsub.s32 %v341, %v343
    %v345 = vrot.slane %v338, %v344
    %v347 = vmul.f32 %v50, %v345
    %v348 = vmul.f32 %v51, %v345
    %v349 = vmul.f32 %v52, %v345
    %v350 = vmul.f32 %v53, %v345
    %v355 = vcombine.high %v347, %v347
    %v356 = vcombine.high %v348, %v348
    %v357 = vcombine.high %v349, %v349
    %v358 = vcombine.high %v350, %v350
    %359 = vrot.lane.b32.xlu0 %v347, 108
    %v360 = vpop.permute.xlu0 %359
    %361 = vrot.lane.b32.xlu0 %v355, 108
    %v362 = vpop.permute.xlu0 %361
    %363 = vrot.lane.b32.xlu0 %v348, 108
    %v364 = vpop.permute.xlu0 %363
    %365 = vrot.lane.b32.xlu0 %v356, 108
    %v366 = vpop.permute.xlu0 %365
    %367 = vrot.lane.b32.xlu0 %v349, 108
    %v368 = vpop.permute.xlu0 %367
    %369 = vrot.lane.b32.xlu0 %v357, 108
    %v370 = vpop.permute.xlu0 %369
    %371 = vrot.lane.b32.xlu0 %v350, 108
    %v372 = vpop.permute.xlu0 %371
    %373 = vrot.lane.b32.xlu0 %v358, 108
    %v374 = vpop.permute.xlu0 %373
    %vm375 = vcmask 883712
    %v376 = vsel %vm375, %v360, %v362
    %v377 = vsel %vm375, %v362, %v364
    %v378 = vsel %vm375, %v364, %v366
    %v379 = vsel %vm375, %v366, %v368
    %v380 = vsel %vm375, %v368, %v370
    %v381 = vsel %vm375, %v370, %v372
    %v382 = vsel %vm375, %v372, %v374
    %v390 = vadd.f32 %v329, %v376
    %v391 = vadd.f32 %v330, %v377
    %v392 = vadd.f32 %v331, %v378
    %v393 = vadd.f32 %v332, %v379
    %v394 = vadd.f32 %v333, %v380
    %v395 = vadd.f32 %v334, %v381
    %v396 = vadd.f32 %v335, %v382
    %397 = vset.pattern.permute.xlu0 6
    %398 = vperm.xlu0 %397, %v54
    %v399 = vpop.permute.xlu0 %398
    %v401 = vunpack.c.l.s4 839922192
    %v402 = vunpack.c.0.s8 %v401
    %v403 = vlaneseq
    %v404 = vshrl.u32 %v403, 7
    %v405 = vsub.s32 %v402, %v404
    %v406 = vrot.slane %v399, %v405
    %v408 = vmul.f32 %v50, %v406
    %v409 = vmul.f32 %v51, %v406
    %v410 = vmul.f32 %v52, %v406
    %v411 = vmul.f32 %v53, %v406
    %v416 = vcombine.high %v408, %v408
    %v417 = vcombine.high %v409, %v409
    %v418 = vcombine.high %v410, %v410
    %v419 = vcombine.high %v411, %v411
    %420 = vrot.lane.b32.xlu0 %v408, 92
    %v421 = vpop.permute.xlu0 %420
    %422 = vrot.lane.b32.xlu0 %v416, 92
    %v423 = vpop.permute.xlu0 %422
    %424 = vrot.lane.b32.xlu0 %v409, 92
    %v425 = vpop.permute.xlu0 %424
    %426 = vrot.lane.b32.xlu0 %v417, 92
    %v427 = vpop.permute.xlu0 %426
    %428 = vrot.lane.b32.xlu0 %v410, 92
    %v429 = vpop.permute.xlu0 %428
    %430 = vrot.lane.b32.xlu0 %v418, 92
    %v431 = vpop.permute.xlu0 %430
    %432 = vrot.lane.b32.xlu0 %v411, 92
    %v433 = vpop.permute.xlu0 %432
    %434 = vrot.lane.b32.xlu0 %v419, 92
    %v435 = vpop.permute.xlu0 %434
    %vm436 = vcmask 752640
    %v437 = vsel %vm436, %v421, %v423
    %v438 = vsel %vm436, %v423, %v425
    %v439 = vsel %vm436, %v425, %v427
    %v440 = vsel %vm436, %v427, %v429
    %v441 = vsel %vm436, %v429, %v431
    %v442 = vsel %vm436, %v431, %v433
    %v443 = vsel %vm436, %v433, %v435
    %v451 = vadd.f32 %v390, %v437
    %v452 = vadd.f32 %v391, %v438
    %v453 = vadd.f32 %v392, %v439
    %v454 = vadd.f32 %v393, %v440
    %v455 = vadd.f32 %v394, %v441
    %v456 = vadd.f32 %v395, %v442
    %v457 = vadd.f32 %v396, %v443
    %458 = vset.pattern.permute.xlu0 7
    %459 = vperm.xlu0 %458, %v54
    %v460 = vpop.permute.xlu0 %459
    %v462 = vunpack.c.l.s4 839922192
    %v463 = vunpack.c.0.s8 %v462
    %v464 = vlaneseq
    %v465 = vshrl.u32 %v464, 7
    %v466 = vsub.s32 %v463, %v465
    %v467 = vrot.slane %v460, %v466
    %v469 = vmul.f32 %v50, %v467
    %v470 = vmul.f32 %v51, %v467
    %v471 = vmul.f32 %v52, %v467
    %v472 = vmul.f32 %v53, %v467
    %v477 = vcombine.high %v469, %v469
    %v478 = vcombine.high %v470, %v470
    %v479 = vcombine.high %v471, %v471
    %v480 = vcombine.high %v472, %v472
    %481 = vrot.lane.b32.xlu0 %v469, 91
    %v482 = vpop.permute.xlu0 %481
    %483 = vrot.lane.b32.xlu0 %v477, 91
    %v484 = vpop.permute.xlu0 %483
    %485 = vrot.lane.b32.xlu0 %v470, 91
    %v486 = vpop.permute.xlu0 %485
    %487 = vrot.lane.b32.xlu0 %v478, 91
    %v488 = vpop.permute.xlu0 %487
    %489 = vrot.lane.b32.xlu0 %v471, 91
    %v490 = vpop.permute.xlu0 %489
    %491 = vrot.lane.b32.xlu0 %v479, 91
    %v492 = vpop.permute.xlu0 %491
    %493 = vrot.lane.b32.xlu0 %v472, 91
    %v494 = vpop.permute.xlu0 %493
    %495 = vrot.lane.b32.xlu0 %v480, 91
    %v496 = vpop.permute.xlu0 %495
    %vm497 = vcmask 744448
    %v498 = vsel %vm497, %v482, %v484
    %v499 = vsel %vm497, %v484, %v486
    %v500 = vsel %vm497, %v486, %v488
    %v501 = vsel %vm497, %v488, %v490
    %v502 = vsel %vm497, %v490, %v492
    %v503 = vsel %vm497, %v492, %v494
    %v504 = vsel %vm497, %v494, %v496
    %v512 = vadd.f32 %v451, %v498
    %v513 = vadd.f32 %v452, %v499
    %v514 = vadd.f32 %v453, %v500
    %v515 = vadd.f32 %v454, %v501
    %v516 = vadd.f32 %v455, %v502
    %v517 = vadd.f32 %v456, %v503
    %v518 = vadd.f32 %v457, %v504
    %519 = vset.pattern.permute.xlu0 8
    %520 = vperm.xlu0 %519, %v54
    %v521 = vpop.permute.xlu0 %520
    %v523 = vunpack.c.l.s4 839922192
    %v524 = vunpack.c.0.s8 %v523
    %v525 = vlaneseq
    %v526 = vshrl.u32 %v525, 7
    %v527 = vsub.s32 %v524, %v526
    %v528 = vrot.slane %v521, %v527
    %v530 = vmul.f32 %v50, %v528
    %v531 = vmul.f32 %v51, %v528
    %v532 = vmul.f32 %v52, %v528
    %v533 = vmul.f32 %v53, %v528
    %v538 = vcombine.high %v530, %v530
    %v539 = vcombine.high %v531, %v531
    %v540 = vcombine.high %v532, %v532
    %v541 = vcombine.high %v533, %v533
    %542 = vrot.lane.b32.xlu0 %v530, 90
    %v543 = vpop.permute.xlu0 %542
    %544 = vrot.lane.b32.xlu0 %v538, 90
    %v545 = vpop.permute.xlu0 %544
    %546 = vrot.lane.b32.xlu0 %v531, 90
    %v547 = vpop.permute.xlu0 %546
    %548 = vrot.lane.b32.xlu0 %v539, 90
    %v549 = vpop.permute.xlu0 %548
    %550 = vrot.lane.b32.xlu0 %v532, 90
    %v551 = vpop.permute.xlu0 %550
    %552 = vrot.lane.b32.xlu0 %v540, 90
    %v553 = vpop.permute.xlu0 %552
    %554 = vrot.lane.b32.xlu0 %v533, 90
    %v555 = vpop.permute.xlu0 %554
    %556 = vrot.lane.b32.xlu0 %v541, 90
    %v557 = vpop.permute.xlu0 %556
    %vm558 = vcmask 736256
    %v559 = vsel %vm558, %v543, %v545
    %v560 = vsel %vm558, %v545, %v547
    %v561 = vsel %vm558, %v547, %v549
    %v562 = vsel %vm558, %v549, %v551
    %v563 = vsel %vm558, %v551, %v553
    %v564 = vsel %vm558, %v553, %v555
    %v565 = vsel %vm558, %v555, %v557
    %v573 = vadd.f32 %v512, %v559
    %v574 = vadd.f32 %v513, %v560
    %v575 = vadd.f32 %v514, %v561
    %v576 = vadd.f32 %v515, %v562
    %v577 = vadd.f32 %v516, %v563
    %v578 = vadd.f32 %v517, %v564
    %v579 = vadd.f32 %v518, %v565
    %581 = vset.pattern.permute.xlu0 4
    %582 = vperm.xlu0 %581, %v55
    %v583 = vpop.permute.xlu0 %582
    %585 = vset.pattern.permute.xlu0 0
    %586 = vperm.xlu0 %585, %v55
    %v587 = vpop.permute.xlu0 %586
    %v589 = vlaneseq
    %v590 = vshrl.u32 %v589, 7
    %v591 = vsub.s32 0, %v590
    %v592 = vrot.slane %v573, %v591
    %v593 = vlaneseq
    %v594 = vshrl.u32 %v593, 7
    %v595 = vsub.s32 0, %v594
    %v596 = vrot.slane %v574, %v595
    %v597 = vlaneseq
    %v598 = vshrl.u32 %v597, 7
    %v599 = vsub.s32 0, %v598
    %v600 = vrot.slane %v575, %v599
    %v601 = vlaneseq
    %v602 = vshrl.u32 %v601, 7
    %v603 = vsub.s32 0, %v602
    %v604 = vrot.slane %v576, %v603
    %v605 = vlaneseq
    %v606 = vshrl.u32 %v605, 7
    %v607 = vsub.s32 0, %v606
    %v608 = vrot.slane %v577, %v607
    %v609 = vlaneseq
    %v610 = vshrl.u32 %v609, 7
    %v611 = vsub.s32 0, %v610
    %v612 = vrot.slane %v578, %v611
    %v613 = vlaneseq
    %v614 = vshrl.u32 %v613, 7
    %v615 = vsub.s32 0, %v614
    %v616 = vrot.slane %v579, %v615
    %v617 = vmul.f32 %v587, %v592
    %v618 = vmul.f32 %v587, %v596
    %v619 = vmul.f32 %v587, %v600
    %v620 = vmul.f32 %v587, %v604
    %v621 = vmul.f32 %v587, %v608
    %v622 = vmul.f32 %v587, %v612
    %v623 = vmul.f32 %v587, %v616
    %v624 = vadd.f32 %v583, %v617
    %v625 = vadd.f32 %v583, %v618
    %v626 = vadd.f32 %v583, %v619
    %v627 = vadd.f32 %v583, %v620
    %v628 = vadd.f32 %v583, %v621
    %v629 = vadd.f32 %v583, %v622
    %v630 = vadd.f32 %v583, %v623
    %631 = vset.pattern.permute.xlu0 1
    %632 = vperm.xlu0 %631, %v55
    %v633 = vpop.permute.xlu0 %632
    %v635 = vlaneseq
    %v636 = vshrl.u32 %v635, 7
    %v637 = vsub.s32 1, %v636
    %v638 = vrot.slane %v573, %v637
    %v639 = vlaneseq
    %v640 = vshrl.u32 %v639, 7
    %v641 = vsub.s32 1, %v640
    %v642 = vrot.slane %v574, %v641
    %v643 = vlaneseq
    %v644 = vshrl.u32 %v643, 7
    %v645 = vsub.s32 1, %v644
    %v646 = vrot.slane %v575, %v645
    %v647 = vlaneseq
    %v648 = vshrl.u32 %v647, 7
    %v649 = vsub.s32 1, %v648
    %v650 = vrot.slane %v576, %v649
    %v651 = vlaneseq
    %v652 = vshrl.u32 %v651, 7
    %v653 = vsub.s32 1, %v652
    %v654 = vrot.slane %v577, %v653
    %v655 = vlaneseq
    %v656 = vshrl.u32 %v655, 7
    %v657 = vsub.s32 1, %v656
    %v658 = vrot.slane %v578, %v657
    %v659 = vlaneseq
    %v660 = vshrl.u32 %v659, 7
    %v661 = vsub.s32 1, %v660
    %v662 = vrot.slane %v579, %v661
    %v663 = vmul.f32 %v633, %v638
    %v664 = vmul.f32 %v633, %v642
    %v665 = vmul.f32 %v633, %v646
    %v666 = vmul.f32 %v633, %v650
    %v667 = vmul.f32 %v633, %v654
    %v668 = vmul.f32 %v633, %v658
    %v669 = vmul.f32 %v633, %v662
    %v670 = vadd.f32 %v624, %v663
    %v671 = vadd.f32 %v625, %v664
    %v672 = vadd.f32 %v626, %v665
    %v673 = vadd.f32 %v627, %v666
    %v674 = vadd.f32 %v628, %v667
    %v675 = vadd.f32 %v629, %v668
    %v676 = vadd.f32 %v630, %v669
    %677 = vset.pattern.permute.xlu0 2
    %678 = vperm.xlu0 %677, %v55
    %v679 = vpop.permute.xlu0 %678
    %v681 = vlaneseq
    %v682 = vshrl.u32 %v681, 7
    %v683 = vsub.s32 2, %v682
    %v684 = vrot.slane %v573, %v683
    %v685 = vlaneseq
    %v686 = vshrl.u32 %v685, 7
    %v687 = vsub.s32 2, %v686
    %v688 = vrot.slane %v574, %v687
    %v689 = vlaneseq
    %v690 = vshrl.u32 %v689, 7
    %v691 = vsub.s32 2, %v690
    %v692 = vrot.slane %v575, %v691
    %v693 = vlaneseq
    %v694 = vshrl.u32 %v693, 7
    %v695 = vsub.s32 2, %v694
    %v696 = vrot.slane %v576, %v695
    %v697 = vlaneseq
    %v698 = vshrl.u32 %v697, 7
    %v699 = vsub.s32 2, %v698
    %v700 = vrot.slane %v577, %v699
    %v701 = vlaneseq
    %v702 = vshrl.u32 %v701, 7
    %v703 = vsub.s32 2, %v702
    %v704 = vrot.slane %v578, %v703
    %v705 = vlaneseq
    %v706 = vshrl.u32 %v705, 7
    %v707 = vsub.s32 2, %v706
    %v708 = vrot.slane %v579, %v707
    %v709 = vmul.f32 %v679, %v684
    %v710 = vmul.f32 %v679, %v688
    %v711 = vmul.f32 %v679, %v692
    %v712 = vmul.f32 %v679, %v696
    %v713 = vmul.f32 %v679, %v700
    %v714 = vmul.f32 %v679, %v704
    %v715 = vmul.f32 %v679, %v708
    %v716 = vadd.f32 %v670, %v709
    %v717 = vadd.f32 %v671, %v710
    %v718 = vadd.f32 %v672, %v711
    %v719 = vadd.f32 %v673, %v712
    %v720 = vadd.f32 %v674, %v713
    %v721 = vadd.f32 %v675, %v714
    %v722 = vadd.f32 %v676, %v715
    %723 = vset.pattern.permute.xlu0 3
    %724 = vperm.xlu0 %723, %v55
    %v725 = vpop.permute.xlu0 %724
    %v727 = vlaneseq
    %v728 = vshrl.u32 %v727, 7
    %v729 = vsub.s32 3, %v728
    %v730 = vrot.slane %v573, %v729
    %v731 = vlaneseq
    %v732 = vshrl.u32 %v731, 7
    %v733 = vsub.s32 3, %v732
    %v734 = vrot.slane %v574, %v733
    %v735 = vlaneseq
    %v736 = vshrl.u32 %v735, 7
    %v737 = vsub.s32 3, %v736
    %v738 = vrot.slane %v575, %v737
    %v739 = vlaneseq
    %v740 = vshrl.u32 %v739, 7
    %v741 = vsub.s32 3, %v740
    %v742 = vrot.slane %v576, %v741
    %v743 = vlaneseq
    %v744 = vshrl.u32 %v743, 7
    %v745 = vsub.s32 3, %v744
    %v746 = vrot.slane %v577, %v745
    %v747 = vlaneseq
    %v748 = vshrl.u32 %v747, 7
    %v749 = vsub.s32 3, %v748
    %v750 = vrot.slane %v578, %v749
    %v751 = vlaneseq
    %v752 = vshrl.u32 %v751, 7
    %v753 = vsub.s32 3, %v752
    %v754 = vrot.slane %v579, %v753
    %v755 = vmul.f32 %v725, %v730
    %v756 = vmul.f32 %v725, %v734
    %v757 = vmul.f32 %v725, %v738
    %v758 = vmul.f32 %v725, %v742
    %v759 = vmul.f32 %v725, %v746
    %v760 = vmul.f32 %v725, %v750
    %v761 = vmul.f32 %v725, %v754
    %v762 = vadd.f32 %v716, %v755
    %v763 = vadd.f32 %v717, %v756
    %v764 = vadd.f32 %v718, %v757
    %v765 = vadd.f32 %v719, %v758
    %v766 = vadd.f32 %v720, %v759
    %v767 = vadd.f32 %v721, %v760
    %v768 = vadd.f32 %v722, %v761
    %769 = vst [vmem:[#allocation8] sm:$0xff] %v762
    %770 = vst [vmem:[#allocation8 + $0x8] sm:$0xff] %v763
    %771 = vst [vmem:[#allocation8 + $0x10] sm:$0xff] %v764
    %772 = vst [vmem:[#allocation8 + $0x18] sm:$0xff] %v765
    %773 = vst [vmem:[#allocation8 + $0x20] sm:$0xff] %v766
    %774 = vst [vmem:[#allocation8 + $0x28] sm:$0xff] %v767
    %775 = vst [vmem:[#allocation8 + $0x30] sm:$0xff] %v768
    // Predicated region
    $region26: #{tpu_custom_call.1} parent=1 // pred_check
      _
    $region27: #{tpu_custom_call.1} parent=1 // pred_check_branch
      %777 = sbr.rel (0) target = $region29
    $region28: #{tpu_custom_call.1} parent=1 // pred_region
      %s779 = ssub.s32 1024, 1024
      %780 = vsyncadd [#allocation4], %s779
      %s782 = sshll.u32 [#allocation8], 4
      %s783 = int_to_ptr.vmem [resolvable:$true] %s782
      %785 = dma.vmem_to_hbm [thread:$0]  %s783, 1024, %s3, [#allocation4]
    $region29: #{tpu_custom_call.1} parent=1 // pred_fallthru
      _
    // Predicated region
    $region30: #{tpu_custom_call.1} parent=1 // pred_check
      _
    $region31: #{tpu_custom_call.1} parent=1 // pred_check_branch
      %787 = sbr.rel (0) target = $region33
    $region32: #{tpu_custom_call.1} parent=1 // pred_region
      %788 = dma.done [#allocation4], 1024
    $region33: #{tpu_custom_call.1} parent=1 // pred_fallthru
      _
    %789 = vsyncpa [#allocation3], 1
    %790 = vsyncpa [#allocation6], 1
    %791 = vsyncpa [#allocation4], 1

</llo_original>
